<compile_context>
chip_gen: v7x
topology: tpu7x:2x2x1
jax: 0.10.0
libtpu: 0.0.40
codegen_flags: <defaults>
</compile_context>

<pallas_src>
import functools

import jax
import jax.numpy as jnp
from jax import lax
from jax.experimental import pallas as pl
from jax.experimental.pallas import tpu as pltpu


def _dsc_kernel(x_ref, wdw_ref, s1_ref, b1_ref, wbig_ref, s2_ref, b2_ref, o_ref, *,
                K, stride, dilation, TH, Wp, Wout, Cin, L_cin, mm_dtype):
    # x_ref    : (1, Hp_pad, Wp*Cin)   one padded image, W/C flattened into lanes
    # wdw_ref  : (K*K, Wout*Cin)       depthwise weights, pre-tiled across W
    # s1_ref/b1_ref : (1, Wout*Cin)    folded BN1 scale/bias (pre-tiled across W)
    # wbig_ref : (Wout*Cin, Wout*Cout) block-diagonal (I_Wout x W_pw) pointwise weights
    # s2_ref/b2_ref : (1, Wout*Cout)   folded BN2 scale/bias (pre-tiled across W)
    # o_ref    : (1, TH, Wout*Cout)    lane-dense output row tile
    t = pl.program_id(1)
    row_start = t * (TH * stride)
    if (TH * stride) % 8 == 0:
        row_start = pl.multiple_of(row_start, 8)

    wdw = wdw_ref[...].astype(jnp.float32)            # (K*K, L_cin)

    if stride == 1:
        # Fast path: one aligned dynamic sublane load of the whole row window, then
        # every tap is a static (sublane, lane) slice + lane-wise FMA.
        TH_in = TH + dilation * (K - 1)
        xt = x_ref[0, pl.ds(row_start, TH_in), :].astype(jnp.float32)   # (TH_in, L_in)
        acc = jnp.zeros((TH, L_cin), jnp.float32)
        for kh in range(K):
            for kw in range(K):
                r0, c0 = kh * dilation, kw * dilation * Cin
                patch = lax.slice(xt, (r0, c0), (r0 + TH, c0 + L_cin))
                acc = acc + patch * wdw[kh * K + kw]
    else:
        # TODO(synk): generic stride>1 path reshapes to 3-D and uses strided slices
        # (one relayout per tap); correct but not tuned for performance.
        TH_in = (TH - 1) * stride + dilation * (K - 1) + 1
        xt = x_ref[0, pl.ds(row_start, TH_in), :].astype(jnp.float32)
        x3 = xt.reshape(TH_in, Wp, Cin)
        acc3 = jnp.zeros((TH, Wout, Cin), jnp.float32)
        for kh in range(K):
            for kw in range(K):
                h0, w0 = kh * dilation, kw * dilation
                patch = lax.slice(x3, (h0, w0, 0),
                                  (h0 + (TH - 1) * stride + 1,
                                   w0 + (Wout - 1) * stride + 1, Cin),
                                  (stride, stride, 1))
                acc3 = acc3 + patch * wdw[kh * K + kw, :Cin]
        acc = acc3.reshape(TH, L_cin)

    # BN1 (folded) + ReLU: per-channel params are pre-tiled across W -> plain
    # lane-wise FMA + max (one sublane broadcast per operand).
    h = jnp.maximum(acc * s1_ref[0] + b1_ref[0], 0.0)

    # Pointwise 1x1 conv as a single flattened MXU matmul against the block-diagonal
    # weight: (TH, Wout*Cin) @ (Wout*Cin, Wout*Cout).  Keeps the intermediate and the
    # output in the same (rows, lanes) layout -> no reshape before the store.
    y = jnp.dot(h.astype(mm_dtype), wbig_ref[...].astype(mm_dtype),
                preferred_element_type=jnp.float32)
    y = jnp.maximum(y * s2_ref[0] + b2_ref[0], 0.0)
    o_ref[0] = y.astype(o_ref.dtype)


def _choose_block_h(Hout, N):
    """Row-tile height: multiple of 8, <=64; prefer full height when batch axis
    already gives >=2 parallel units of work (fewer grid steps)."""
    if Hout <= 8:
        return Hout
    full = -(-Hout // 8) * 8
    if N >= 2:
        return min(64, full)
    half = -(-(-(-Hout // 2)) // 8) * 8          # ceil(Hout/2) rounded up to x8
    return max(8, min(64, half, full))


def depthwise_separable_conv(x_nchw, params, *, kernel_size, stride=1, padding=0,
                             dilation=1, eps=1e-5, block_h=None):
    """Forward pass matching PyTorch DepthwiseSeparableConv (eval-mode BN)."""
    w_dw = params["w_dw"]            # (Cin, 1, K, K)
    w_pw = params["w_pw"]            # (Cout, Cin, 1, 1)
    g1, b1, m1, v1 = params["bn1"]   # each (Cin,)
    g2, b2, m2, v2 = params["bn2"]   # each (Cout,)

    N, Cin, H, W = x_nchw.shape
    Cout = w_pw.shape[0]
    K = kernel_size

    # ---- geometry ----------------------------------------------------------
    Hp, Wp = H + 2 * padding, W + 2 * padding
    span = dilation * (K - 1) + 1
    Hout = (Hp - span) // stride + 1
    Wout = (Wp - span) // stride + 1

    TH = block_h if block_h is not None else _choose_block_h(Hout, N)
    T = -(-Hout // TH)                      # number of row tiles
    Hout_pad = T * TH
    Hp_need = (Hout_pad - 1) * stride + dilation * (K - 1) + 1
    extra_rows = max(0, Hp_need - Hp)
    Hp_pad = Hp + extra_rows

    L_in, L_cin, L_out = Wp * Cin, Wout * Cin, Wout * Cout

    # ---- layout: NCHW -> (N, Hp_pad, Wp*Cin), zero padded --------------------
    # TODO(synk): accepting/returning NHWC directly would remove these boundary
    # transposes (each is an extra HBM pass over the activations).
    x = jnp.transpose(x_nchw, (0, 2, 3, 1))
    x = jnp.pad(x, ((0, 0), (padding, padding + extra_rows),
                    (padding, padding), (0, 0)))
    x_flat = x.reshape(N, Hp_pad, L_in)

    # ---- weights / folded BN, pre-tiled for the lane-dense layout ------------
    mm_dtype = jnp.bfloat16 if x_nchw.dtype == jnp.bfloat16 else jnp.float32

    wdw_kkc = jnp.transpose(w_dw[:, 0, :, :], (1, 2, 0)).reshape(K * K, Cin)
    wdw_lane = jnp.tile(wdw_kkc[:, None, :], (1, Wout, 1)).reshape(K * K, L_cin)
    wdw_lane = wdw_lane.astype(jnp.float32)

    wpw_cc = jnp.transpose(w_pw[:, :, 0, 0], (1, 0)).astype(jnp.float32)   # (Cin, Cout)
    # Block-diagonal I_Wout (x) W_pw -> pointwise conv becomes one flattened matmul.
    # TODO(synk): for large Wout*C this matrix gets big; large-channel configs want a
    # channel-tiled NHWC variant of this kernel instead.
    w_big = (jnp.eye(Wout, dtype=jnp.float32)[:, None, :, None]
             * wpw_cc[None, :, None, :]).reshape(L_cin, L_out).astype(mm_dtype)

    inv1 = g1 / jnp.sqrt(v1 + eps)
    inv2 = g2 / jnp.sqrt(v2 + eps)
    s1_lane = jnp.tile(inv1, Wout).reshape(1, L_cin).astype(jnp.float32)
    b1_lane = jnp.tile(b1 - m1 * inv1, Wout).reshape(1, L_cin).astype(jnp.float32)
    s2_lane = jnp.tile(inv2, Wout).reshape(1, L_out).astype(jnp.float32)
    b2_lane = jnp.tile(b2 - m2 * inv2, Wout).reshape(1, L_out).astype(jnp.float32)

    # ---- VMEM budget (double-buffered tiles), v7x-safe -----------------------
    def _tile_bytes(s, l):
        return ((s + 7) // 8 * 8) * ((l + 127) // 128 * 128) * 4
    est = 2 * (_tile_bytes(Hp_pad, L_in) + _tile_bytes(TH, L_out)
               + _tile_bytes(L_cin, L_out) + _tile_bytes(K * K, L_cin)
               + 4 * _tile_bytes(1, max(L_cin, L_out)))
    vmem_limit = int(min(48 << 20, max(24 << 20, 2 * est)))

    kernel = functools.partial(
        _dsc_kernel, K=K, stride=stride, dilation=dilation, TH=TH,
        Wp=Wp, Wout=Wout, Cin=Cin, L_cin=L_cin, mm_dtype=mm_dtype)

    out_flat = pl.pallas_call(
        kernel,
        out_shape=jax.ShapeDtypeStruct((N, Hout_pad, L_out), x_nchw.dtype),
        grid_spec=pltpu.PrefetchScalarGridSpec(
            num_scalar_prefetch=0,
            grid=(N, T),   # t fastest -> the per-image input block is fetched once per n
            in_specs=[
                pl.BlockSpec((1, Hp_pad, L_in), lambda n, t: (n, 0, 0)),
                pl.BlockSpec((K * K, L_cin), lambda n, t: (0, 0)),
                pl.BlockSpec((1, L_cin), lambda n, t: (0, 0)),
                pl.BlockSpec((1, L_cin), lambda n, t: (0, 0)),
                pl.BlockSpec((L_cin, L_out), lambda n, t: (0, 0)),
                pl.BlockSpec((1, L_out), lambda n, t: (0, 0)),
                pl.BlockSpec((1, L_out), lambda n, t: (0, 0)),
            ],
            out_specs=pl.BlockSpec((1, TH, L_out), lambda n, t: (n, t, 0)),
        ),
        compiler_params=pltpu.CompilerParams(
            dimension_semantics=("parallel", "parallel"),
            vmem_limit_bytes=vmem_limit),
    )(x_flat, wdw_lane, s1_lane, b1_lane, w_big, s2_lane, b2_lane)

    out = out_flat[:, :Hout, :].reshape(N, Hout, Wout, Cout)
    return jnp.transpose(out, (0, 3, 1, 2))


def make_params(key, in_channels, out_channels, kernel_size):
    k0, k1, k2, k3 = jax.random.split(key, 4)
    w_dw = jax.random.normal(k0, (in_channels, 1, kernel_size, kernel_size),
                             jnp.float32) * 0.1
    w_pw = jax.random.normal(k1, (out_channels, in_channels, 1, 1),
                             jnp.float32) * 0.1
    # Deterministic synthetic BN params (eval-mode running stats).
    bn1 = (jnp.ones((in_channels,)) * 1.1,
           jnp.ones((in_channels,)) * 0.05,
           jax.random.normal(k2, (in_channels,), jnp.float32) * 0.01,
           jnp.ones((in_channels,)) * 0.9)
    bn2 = (jnp.ones((out_channels,)) * 0.95,
           jnp.ones((out_channels,)) * -0.02,
           jax.random.normal(k3, (out_channels,), jnp.float32) * 0.01,
           jnp.ones((out_channels,)) * 1.05)
    return {"w_dw": w_dw, "w_pw": w_pw, "bn1": bn1, "bn2": bn2}


def _reference_forward(x_nchw, params, *, stride, padding, dilation, eps=1e-5):
    """Pure-JAX reference (PyTorch eval-mode semantics)."""
    w_dw, w_pw = params["w_dw"], params["w_pw"]
    g1, b1, m1, v1 = params["bn1"]
    g2, b2, m2, v2 = params["bn2"]
    Cin = x_nchw.shape[1]
    dn = ("NCHW", "OIHW", "NCHW")
    y = lax.conv_general_dilated(
        x_nchw, w_dw, window_strides=(stride, stride),
        padding=[(padding, padding)] * 2, rhs_dilation=(dilation, dilation),
        dimension_numbers=dn, feature_group_count=Cin,
        precision=lax.Precision.HIGHEST)
    y = (y - m1[None, :, None, None]) * (g1 / jnp.sqrt(v1 + eps))[None, :, None, None] \
        + b1[None, :, None, None]
    y = jnp.maximum(y, 0.0)
    y = lax.conv_general_dilated(
        y, w_pw, window_strides=(1, 1), padding=[(0, 0)] * 2,
        dimension_numbers=dn, precision=lax.Precision.HIGHEST)
    y = (y - m2[None, :, None, None]) * (g2 / jnp.sqrt(v2 + eps))[None, :, None, None] \
        + b2[None, :, None, None]
    return jnp.maximum(y, 0.0)


if __name__ == "__main__":
    # TODO(synk): PyTorch BN in training mode uses batch statistics; this kernel
    # implements the standard inference (running-stats) form.
    key = jax.random.PRNGKey(0)
    kx, kp = jax.random.split(key)

    B, Cin, Cout, H, W, K = 2, 4, 8, 16, 16, 3
    x = jax.random.normal(kx, (B, Cin, H, W), jnp.float32)
    params = make_params(kp, Cin, Cout, K)

    out = depthwise_separable_conv(x, params, kernel_size=K, stride=1,
                                   padding=1, dilation=1)
    out = jax.block_until_ready(out)
    assert out.shape == (B, Cout, H, W)

    ref = _reference_forward(x, params, stride=1, padding=1, dilation=1)
    err = float(jnp.max(jnp.abs(out - ref)))
    assert err < 2e-3, f"kernel/reference mismatch: max abs err = {err}"
    print("KERNEL_OK")
</pallas_src>

<mosaic_0001>
module attributes {stable_mosaic.version = 11 : i64} {
  func.func @_dsc_kernel(%arg0: i32, %arg1: i32, %arg2: memref<1x18x72xf32, #tpu.memory_space<vmem>>, %arg3: memref<9x64xf32, #tpu.memory_space<vmem>>, %arg4: memref<1x64xf32, #tpu.memory_space<vmem>>, %arg5: memref<1x64xf32, #tpu.memory_space<vmem>>, %arg6: memref<64x128xf32, #tpu.memory_space<vmem>>, %arg7: memref<1x128xf32, #tpu.memory_space<vmem>>, %arg8: memref<1x128xf32, #tpu.memory_space<vmem>>, %arg9: memref<1x16x128xf32, #tpu.memory_space<vmem>>) attributes {dimension_semantics = [#tpu.dimension_semantics<parallel>, #tpu.dimension_semantics<parallel>], iteration_bounds = array<i64: 2, 1>, scalar_prefetch = 0 : i64, scratch_operands = 0 : i64, tpu.core_type = #tpu.core_type<tc>, window_params = [{transform_indices = @transform_0, window_bounds = array<i64: 1, 18, 72>}, {pipeline_mode = #tpu.pipeline_mode<synchronous>, transform_indices = @transform_1, window_bounds = array<i64: 9, 64>}, {pipeline_mode = #tpu.pipeline_mode<synchronous>, transform_indices = @transform_2, window_bounds = array<i64: 1, 64>}, {pipeline_mode = #tpu.pipeline_mode<synchronous>, transform_indices = @transform_3, window_bounds = array<i64: 1, 64>}, {pipeline_mode = #tpu.pipeline_mode<synchronous>, transform_indices = @transform_4, window_bounds = array<i64: 64, 128>}, {pipeline_mode = #tpu.pipeline_mode<synchronous>, transform_indices = @transform_5, window_bounds = array<i64: 1, 128>}, {pipeline_mode = #tpu.pipeline_mode<synchronous>, transform_indices = @transform_6, window_bounds = array<i64: 1, 128>}, {transform_indices = @transform_7, window_bounds = array<i64: 1, 16, 128>}]} {
    %c16_i32 = arith.constant 16 : i32
    %0 = arith.muli %arg1, %c16_i32 : i32
    %1 = tpu.assume_multiple %0, 8 : i32
    %c0 = arith.constant 0 : index
    %c0_0 = arith.constant 0 : index
    %2 = vector.load %arg3[%c0, %c0_0] : memref<9x64xf32, #tpu.memory_space<vmem>>, vector<9x64xf32>
    %c0_1 = arith.constant 0 : index
    %3 = arith.index_cast %1 : i32 to index
    %c0_2 = arith.constant 0 : index
    %4 = vector.load %arg2[%c0_1, %3, %c0_2] : memref<1x18x72xf32, #tpu.memory_space<vmem>>, vector<1x18x72xf32>
    %5 = vector.shape_cast %4 : vector<1x18x72xf32> to vector<18x72xf32>
    %cst = arith.constant 0.000000e+00 : f32
    %6 = vector.broadcast %cst : f32 to vector<16x64xf32>
    %7 = vector.extract_strided_slice %5 {offsets = [0, 0], sizes = [16, 64], strides = [1, 1]} : vector<18x72xf32> to vector<16x64xf32>
    %8 = vector.extract_strided_slice %2 {offsets = [0, 0], sizes = [1, 64], strides = [1, 1]} : vector<9x64xf32> to vector<1x64xf32>
    %9 = vector.shape_cast %8 : vector<1x64xf32> to vector<64xf32>
    %10 = vector.shape_cast %9 : vector<64xf32> to vector<1x64xf32>
    %11 = vector.broadcast %10 : vector<1x64xf32> to vector<16x64xf32>
    %12 = arith.mulf %7, %11 : vector<16x64xf32>
    %13 = arith.addf %6, %12 : vector<16x64xf32>
    %14 = vector.extract_strided_slice %5 {offsets = [0, 4], sizes = [16, 64], strides = [1, 1]} : vector<18x72xf32> to vector<16x64xf32>
    %15 = vector.extract_strided_slice %2 {offsets = [1, 0], sizes = [1, 64], strides = [1, 1]} : vector<9x64xf32> to vector<1x64xf32>
    %16 = vector.shape_cast %15 : vector<1x64xf32> to vector<64xf32>
    %17 = vector.shape_cast %16 : vector<64xf32> to vector<1x64xf32>
    %18 = vector.broadcast %17 : vector<1x64xf32> to vector<16x64xf32>
    %19 = arith.mulf %14, %18 : vector<16x64xf32>
    %20 = arith.addf %13, %19 : vector<16x64xf32>
    %21 = vector.extract_strided_slice %5 {offsets = [0, 8], sizes = [16, 64], strides = [1, 1]} : vector<18x72xf32> to vector<16x64xf32>
    %22 = vector.extract_strided_slice %2 {offsets = [2, 0], sizes = [1, 64], strides = [1, 1]} : vector<9x64xf32> to vector<1x64xf32>
    %23 = vector.shape_cast %22 : vector<1x64xf32> to vector<64xf32>
    %24 = vector.shape_cast %23 : vector<64xf32> to vector<1x64xf32>
    %25 = vector.broadcast %24 : vector<1x64xf32> to vector<16x64xf32>
    %26 = arith.mulf %21, %25 : vector<16x64xf32>
    %27 = arith.addf %20, %26 : vector<16x64xf32>
    %28 = vector.extract_strided_slice %5 {offsets = [1, 0], sizes = [16, 64], strides = [1, 1]} : vector<18x72xf32> to vector<16x64xf32>
    %29 = vector.extract_strided_slice %2 {offsets = [3, 0], sizes = [1, 64], strides = [1, 1]} : vector<9x64xf32> to vector<1x64xf32>
    %30 = vector.shape_cast %29 : vector<1x64xf32> to vector<64xf32>
    %31 = vector.shape_cast %30 : vector<64xf32> to vector<1x64xf32>
    %32 = vector.broadcast %31 : vector<1x64xf32> to vector<16x64xf32>
    %33 = arith.mulf %28, %32 : vector<16x64xf32>
    %34 = arith.addf %27, %33 : vector<16x64xf32>
    %35 = vector.extract_strided_slice %5 {offsets = [1, 4], sizes = [16, 64], strides = [1, 1]} : vector<18x72xf32> to vector<16x64xf32>
    %36 = vector.extract_strided_slice %2 {offsets = [4, 0], sizes = [1, 64], strides = [1, 1]} : vector<9x64xf32> to vector<1x64xf32>
    %37 = vector.shape_cast %36 : vector<1x64xf32> to vector<64xf32>
    %38 = vector.shape_cast %37 : vector<64xf32> to vector<1x64xf32>
    %39 = vector.broadcast %38 : vector<1x64xf32> to vector<16x64xf32>
    %40 = arith.mulf %35, %39 : vector<16x64xf32>
    %41 = arith.addf %34, %40 : vector<16x64xf32>
    %42 = vector.extract_strided_slice %5 {offsets = [1, 8], sizes = [16, 64], strides = [1, 1]} : vector<18x72xf32> to vector<16x64xf32>
    %43 = vector.extract_strided_slice %2 {offsets = [5, 0], sizes = [1, 64], strides = [1, 1]} : vector<9x64xf32> to vector<1x64xf32>
    %44 = vector.shape_cast %43 : vector<1x64xf32> to vector<64xf32>
    %45 = vector.shape_cast %44 : vector<64xf32> to vector<1x64xf32>
    %46 = vector.broadcast %45 : vector<1x64xf32> to vector<16x64xf32>
    %47 = arith.mulf %42, %46 : vector<16x64xf32>
    %48 = arith.addf %41, %47 : vector<16x64xf32>
    %49 = vector.extract_strided_slice %5 {offsets = [2, 0], sizes = [16, 64], strides = [1, 1]} : vector<18x72xf32> to vector<16x64xf32>
    %50 = vector.extract_strided_slice %2 {offsets = [6, 0], sizes = [1, 64], strides = [1, 1]} : vector<9x64xf32> to vector<1x64xf32>
    %51 = vector.shape_cast %50 : vector<1x64xf32> to vector<64xf32>
    %52 = vector.shape_cast %51 : vector<64xf32> to vector<1x64xf32>
    %53 = vector.broadcast %52 : vector<1x64xf32> to vector<16x64xf32>
    %54 = arith.mulf %49, %53 : vector<16x64xf32>
    %55 = arith.addf %48, %54 : vector<16x64xf32>
    %56 = vector.extract_strided_slice %5 {offsets = [2, 4], sizes = [16, 64], strides = [1, 1]} : vector<18x72xf32> to vector<16x64xf32>
    %57 = vector.extract_strided_slice %2 {offsets = [7, 0], sizes = [1, 64], strides = [1, 1]} : vector<9x64xf32> to vector<1x64xf32>
    %58 = vector.shape_cast %57 : vector<1x64xf32> to vector<64xf32>
    %59 = vector.shape_cast %58 : vector<64xf32> to vector<1x64xf32>
    %60 = vector.broadcast %59 : vector<1x64xf32> to vector<16x64xf32>
    %61 = arith.mulf %56, %60 : vector<16x64xf32>
    %62 = arith.addf %55, %61 : vector<16x64xf32>
    %63 = vector.extract_strided_slice %5 {offsets = [2, 8], sizes = [16, 64], strides = [1, 1]} : vector<18x72xf32> to vector<16x64xf32>
    %64 = vector.extract_strided_slice %2 {offsets = [8, 0], sizes = [1, 64], strides = [1, 1]} : vector<9x64xf32> to vector<1x64xf32>
    %65 = vector.shape_cast %64 : vector<1x64xf32> to vector<64xf32>
    %66 = vector.shape_cast %65 : vector<64xf32> to vector<1x64xf32>
    %67 = vector.broadcast %66 : vector<1x64xf32> to vector<16x64xf32>
    %68 = arith.mulf %63, %67 : vector<16x64xf32>
    %69 = arith.addf %62, %68 : vector<16x64xf32>
    %c0_3 = arith.constant 0 : index
    %c0_4 = arith.constant 0 : index
    %70 = vector.load %arg4[%c0_3, %c0_4] : memref<1x64xf32, #tpu.memory_space<vmem>>, vector<1x64xf32>
    %71 = vector.shape_cast %70 : vector<1x64xf32> to vector<64xf32>
    %72 = vector.shape_cast %71 : vector<64xf32> to vector<1x64xf32>
    %73 = vector.broadcast %72 : vector<1x64xf32> to vector<16x64xf32>
    %74 = arith.mulf %69, %73 : vector<16x64xf32>
    %c0_5 = arith.constant 0 : index
    %c0_6 = arith.constant 0 : index
    %75 = vector.load %arg5[%c0_5, %c0_6] : memref<1x64xf32, #tpu.memory_space<vmem>>, vector<1x64xf32>
    %76 = vector.shape_cast %75 : vector<1x64xf32> to vector<64xf32>
    %77 = vector.shape_cast %76 : vector<64xf32> to vector<1x64xf32>
    %78 = vector.broadcast %77 : vector<1x64xf32> to vector<16x64xf32>
    %79 = arith.addf %74, %78 : vector<16x64xf32>
    %cst_7 = arith.constant 0.000000e+00 : f32
    %80 = vector.broadcast %cst_7 : f32 to vector<16x64xf32>
    %81 = arith.maximumf %79, %80 : vector<16x64xf32>
    %c0_8 = arith.constant 0 : index
    %c0_9 = arith.constant 0 : index
    %82 = vector.load %arg6[%c0_8, %c0_9] : memref<64x128xf32, #tpu.memory_space<vmem>>, vector<64x128xf32>
    %cst_10 = arith.constant dense<0.000000e+00> : vector<16x128xf32>
    %83 = tpu.matmul %81, %82, %cst_10 {dimension_numbers = #tpu.dot_dimension_numbers<[1], [0], [0], [1], [0, 0, 1, 1], [], []>} : vector<16x64xf32>, vector<64x128xf32>, vector<16x128xf32> -> vector<16x128xf32>
    %c0_11 = arith.constant 0 : index
    %c0_12 = arith.constant 0 : index
    %84 = vector.load %arg7[%c0_11, %c0_12] : memref<1x128xf32, #tpu.memory_space<vmem>>, vector<1x128xf32>
    %85 = vector.shape_cast %84 : vector<1x128xf32> to vector<128xf32>
    %86 = vector.shape_cast %85 : vector<128xf32> to vector<1x128xf32>
    %87 = vector.broadcast %86 : vector<1x128xf32> to vector<16x128xf32>
    %88 = arith.mulf %83, %87 : vector<16x128xf32>
    %c0_13 = arith.constant 0 : index
    %c0_14 = arith.constant 0 : index
    %89 = vector.load %arg8[%c0_13, %c0_14] : memref<1x128xf32, #tpu.memory_space<vmem>>, vector<1x128xf32>
    %90 = vector.shape_cast %89 : vector<1x128xf32> to vector<128xf32>
    %91 = vector.shape_cast %90 : vector<128xf32> to vector<1x128xf32>
    %92 = vector.broadcast %91 : vector<1x128xf32> to vector<16x128xf32>
    %93 = arith.addf %88, %92 : vector<16x128xf32>
    %cst_15 = arith.constant 0.000000e+00 : f32
    %94 = vector.broadcast %cst_15 : f32 to vector<16x128xf32>
    %95 = arith.maximumf %93, %94 : vector<16x128xf32>
    %c0_16 = arith.constant 0 : index
    %c0_17 = arith.constant 0 : index
    %c0_18 = arith.constant 0 : index
    %96 = vector.load %arg9[%c0_16, %c0_17, %c0_18] : memref<1x16x128xf32, #tpu.memory_space<vmem>>, vector<1x16x128xf32>
    %97 = vector.shape_cast %96 : vector<1x16x128xf32> to vector<16x128xf32>
    %98 = vector.shape_cast %95 : vector<16x128xf32> to vector<1x16x128xf32>
    tpu.vector_store %arg9[%c0_16, %c0_17, %c0_18], %98 {strides = array<i32>} : memref<1x16x128xf32, #tpu.memory_space<vmem>>, vector<1x16x128xf32>,
    return
  }
  func.func @transform_0(%arg0: i32, %arg1: i32) -> (i32, i32, i32) {
    %c0_i32 = arith.constant 0 : i32
    %c0_i32_0 = arith.constant 0 : i32
    %c0_i32_1 = arith.constant 0 : i32
    return %arg0, %c0_i32, %c0_i32_0 : i32, i32, i32
  }
  func.func @transform_1(%arg0: i32, %arg1: i32) -> (i32, i32) {
    %c0_i32 = arith.constant 0 : i32
    %c0_i32_0 = arith.constant 0 : i32
    %c0_i32_1 = arith.constant 0 : i32
    return %c0_i32, %c0_i32_0 : i32, i32
  }
  func.func @transform_2(%arg0: i32, %arg1: i32) -> (i32, i32) {
    %c0_i32 = arith.constant 0 : i32
    %c0_i32_0 = arith.constant 0 : i32
    %c0_i32_1 = arith.constant 0 : i32
    return %c0_i32, %c0_i32_0 : i32, i32
  }
  func.func @transform_3(%arg0: i32, %arg1: i32) -> (i32, i32) {
    %c0_i32 = arith.constant 0 : i32
    %c0_i32_0 = arith.constant 0 : i32
    %c0_i32_1 = arith.constant 0 : i32
    return %c0_i32, %c0_i32_0 : i32, i32
  }
  func.func @transform_4(%arg0: i32, %arg1: i32) -> (i32, i32) {
    %c0_i32 = arith.constant 0 : i32
    %c0_i32_0 = arith.constant 0 : i32
    %c0_i32_1 = arith.constant 0 : i32
    return %c0_i32, %c0_i32_0 : i32, i32
  }
  func.func @transform_5(%arg0: i32, %arg1: i32) -> (i32, i32) {
    %c0_i32 = arith.constant 0 : i32
    %c0_i32_0 = arith.constant 0 : i32
    %c0_i32_1 = arith.constant 0 : i32
    return %c0_i32, %c0_i32_0 : i32, i32
  }
  func.func @transform_6(%arg0: i32, %arg1: i32) -> (i32, i32) {
    %c0_i32 = arith.constant 0 : i32
    %c0_i32_0 = arith.constant 0 : i32
    %c0_i32_1 = arith.constant 0 : i32
    return %c0_i32, %c0_i32_0 : i32, i32
  }
  func.func @transform_7(%arg0: i32, %arg1: i32) -> (i32, i32, i32) {
    %c0_i32 = arith.constant 0 : i32
    %c0_i32_0 = arith.constant 0 : i32
    return %arg0, %arg1, %c0_i32 : i32, i32, i32
  }
}

</mosaic_0001>

<llo_original>
// kernel: tpu_custom_call.1
$region0: #{tpu_custom_call.1}
  #allocation0 [shape = 'u32[]', space=smem, size = 0x4, offset = 0x4, fixed_abs, tag = 'smem constant byte address 0x4 - core index']
  #allocation1 [shape = 'u32[144,128]{1,0:T(1,128)}', space=vmem, size = 0x12000, scoped, tag = 'internal scratch']
  %s0 = inlined_call_operand.vmem [shape: f32[2,18,72], index: 0, kind: input, shape index: {}]
  %s1 = inlined_call_operand.vmem [shape: f32[9,64], index: 1, kind: input, shape index: {}]
  %s2 = inlined_call_operand.vmem [shape: f32[1,64], index: 2, kind: input, shape index: {}]
  %s3 = inlined_call_operand.vmem [shape: f32[1,64], index: 3, kind: input, shape index: {}]
  %s4 = inlined_call_operand.vmem [shape: f32[64,128], index: 4, kind: input, shape index: {}]
  %s5 = inlined_call_operand.vmem [shape: f32[1,128], index: 5, kind: input, shape index: {}]
  %s6 = inlined_call_operand.vmem [shape: f32[1,128], index: 6, kind: input, shape index: {}]
  %s7 = inlined_call_operand.hbm [shape: f32[2,16,128], index: 7, kind: output, shape index: {}]
  %s8 = sld [smem:[#allocation0]]
  $region61: #{tpu_custom_call.1} parent=0
    _
  %s10 = ssub.s32 1, %s8
  %s11 = scalar_select 0, %s10, %s8
  $region1: #{tpu_custom_call.1} parent=0
    #allocation2 [shape = 'u8[16384]{0}', space=vmem, size = 0x4000, scoped, tag = 'output window, operand 0']
    #allocation3 [shape = 's32[2]{0}', space=sflag, size = 0x8, scoped, tag = 'scoped memory for tpu_custom_call.1']
    %12 = vsyncpa [#allocation3], 0
    %s13 = scalar_lea.sflag [#allocation3], 1
    %14 = vsyncpa %s13, 0
    loop: start=0, step=1, limit=4
    $region2: #{tpu_custom_call.1} parent=1 // loop_pre_header
      _
    $region3: #{tpu_custom_call.1} parent=1 // loop_header
      %s16 = sphi 0, %s20
      %p17 = scmp.ge.s32.totalorder %s16, 4
      %s23 = sphi 0, %s35
      %s24 = sphi 0, %s31
      %s25 = sphi 0, %s23
      %s26 = sphi 0, %s24
      %s27 = sphi 0, %s25
      %s28 = sphi 0, %s26
      %s38 = sphi 0, %s40
      %s41 = sphi 0, %s38
      %s42 = sphi 0, %s41
      %s58 = sphi 0, %s42
      %s62 = sphi 0, %s62
      %s64 = sphi 0, %s62
      %s65 = sphi 0, %s64
      %s79 = sphi 0, %s65
      %s83 = sphi 0, %s83
      %s85 = sphi 0, %s83
      %s86 = sphi 0, %s85
      %s100 = sphi 0, %s86
      %s104 = sphi 0, %s104
      %s106 = sphi 0, %s104
      %s107 = sphi 0, %s106
      %s121 = sphi 0, %s107
      %s125 = sphi 0, %s125
      %s127 = sphi 0, %s125
      %s128 = sphi 0, %s127
      %s142 = sphi 0, %s128
      %s146 = sphi 0, %s146
      %s148 = sphi 0, %s146
      %s149 = sphi 0, %s148
      %s163 = sphi 0, %s149
      %s167 = sphi 0, %s167
      %s169 = sphi 0, %s167
      %s170 = sphi 0, %s169
      %s184 = sphi 0, %s170
      %s192 = sphi 0, %s194
      %s195 = sphi 0, %s192
      %s196 = sphi 0, %s195
      %s212 = sphi 0, %s196
    $region4: #{tpu_custom_call.1} parent=1 // loop_header_branch
      %19 = sbr.rel (%p17) target = $region8
    $region5: #{tpu_custom_call.1} parent=1 // loop_body
      %s21 = ssub.s32 %s16, 1
      %s22 = ssub.s32 %s16, 2
      %s29 = sadd.s32 1, %s24
      %p30 = scmp.ge.s32.totalorder %s29, 1
      %s31 = scalar_select %p30, 0, %s29
      %s32 = sadd.s32 1, %s23
      %s33 = scalar_select %p30, %s32, %s23
      %p34 = scmp.ge.s32.totalorder %s33, 2
      %s35 = scalar_select %p34, 0, %s33
      %s36 = ssub.s32 %s23, %s35
      %p37 = scmp.eq.s32.totalorder %s36, 0
      %s39 = sadd.s32 %s38, 1
      %s40 = scalar_select %p37, %s38, %s39
      %p43 = pneg %p37
      %p44 = scmp.eq.s32.totalorder %s16, 1
      %p45 = por %p43, %p44
      %p46 = scmp.ne.s32.totalorder %s38, %s41
      %p47 = scmp.eq.s32.totalorder %s16, 0
      %p48 = por %p46, %p47
      %p49 = scmp.ne.s32.totalorder %s38, %s41
      %p50 = scmp.eq.s32.totalorder %s21, 1
      %p51 = por %p49, %p50
      %p52 = scmp.ne.s32.totalorder %s41, %s42
      %p53 = scmp.eq.s32.totalorder %s21, 0
      %p54 = por %p52, %p53
      %p55 = scmp.ne.s32.totalorder %s41, %s42
      %p56 = scmp.eq.s32.totalorder %s22, 1
      %p57 = por %p55, %p56
      %p59 = scmp.ne.s32.totalorder %s42, %s58
      %p60 = scmp.eq.s32.totalorder %s22, 0
      %p61 = por %p59, %p60
      %s63 = sadd.s32 %s62, 1
      %p66 = scmp.eq.s32.totalorder %s16, 1
      %p67 = scmp.ne.s32.totalorder %s62, %s64
      %p68 = scmp.eq.s32.totalorder %s16, 0
      %p69 = por %p67, %p68
      %p70 = scmp.ne.s32.totalorder %s62, %s64
      %p71 = scmp.eq.s32.totalorder %s21, 1
      %p72 = por %p70, %p71
      %p73 = scmp.ne.s32.totalorder %s64, %s65
      %p74 = scmp.eq.s32.totalorder %s21, 0
      %p75 = por %p73, %p74
      %p76 = scmp.ne.s32.totalorder %s64, %s65
      %p77 = scmp.eq.s32.totalorder %s22, 1
      %p78 = por %p76, %p77
      %p80 = scmp.ne.s32.totalorder %s65, %s79
      %p81 = scmp.eq.s32.totalorder %s22, 0
      %p82 = por %p80, %p81
      %s84 = sadd.s32 %s83, 1
      %p87 = scmp.eq.s32.totalorder %s16, 1
      %p88 = scmp.ne.s32.totalorder %s83, %s85
      %p89 = scmp.eq.s32.totalorder %s16, 0
      %p90 = por %p88, %p89
      %p91 = scmp.ne.s32.totalorder %s83, %s85
      %p92 = scmp.eq.s32.totalorder %s21, 1
      %p93 = por %p91, %p92
      %p94 = scmp.ne.s32.totalorder %s85, %s86
      %p95 = scmp.eq.s32.totalorder %s21, 0
      %p96 = por %p94, %p95
      %p97 = scmp.ne.s32.totalorder %s85, %s86
      %p98 = scmp.eq.s32.totalorder %s22, 1
      %p99 = por %p97, %p98
      %p101 = scmp.ne.s32.totalorder %s86, %s100
      %p102 = scmp.eq.s32.totalorder %s22, 0
      %p103 = por %p101, %p102
      %s105 = sadd.s32 %s104, 1
      %p108 = scmp.eq.s32.totalorder %s16, 1
      %p109 = scmp.ne.s32.totalorder %s104, %s106
      %p110 = scmp.eq.s32.totalorder %s16, 0
      %p111 = por %p109, %p110
      %p112 = scmp.ne.s32.totalorder %s104, %s106
      %p113 = scmp.eq.s32.totalorder %s21, 1
      %p114 = por %p112, %p113
      %p115 = scmp.ne.s32.totalorder %s106, %s107
      %p116 = scmp.eq.s32.totalorder %s21, 0
      %p117 = por %p115, %p116
      %p118 = scmp.ne.s32.totalorder %s106, %s107
      %p119 = scmp.eq.s32.totalorder %s22, 1
      %p120 = por %p118, %p119
      %p122 = scmp.ne.s32.totalorder %s107, %s121
      %p123 = scmp.eq.s32.totalorder %s22, 0
      %p124 = por %p122, %p123
      %s126 = sadd.s32 %s125, 1
      %p129 = scmp.eq.s32.totalorder %s16, 1
      %p130 = scmp.ne.s32.totalorder %s125, %s127
      %p131 = scmp.eq.s32.totalorder %s16, 0
      %p132 = por %p130, %p131
      %p133 = scmp.ne.s32.totalorder %s125, %s127
      %p134 = scmp.eq.s32.totalorder %s21, 1
      %p135 = por %p133, %p134
      %p136 = scmp.ne.s32.totalorder %s127, %s128
      %p137 = scmp.eq.s32.totalorder %s21, 0
      %p138 = por %p136, %p137
      %p139 = scmp.ne.s32.totalorder %s127, %s128
      %p140 = scmp.eq.s32.totalorder %s22, 1
      %p141 = por %p139, %p140
      %p143 = scmp.ne.s32.totalorder %s128, %s142
      %p144 = scmp.eq.s32.totalorder %s22, 0
      %p145 = por %p143, %p144
      %s147 = sadd.s32 %s146, 1
      %p150 = scmp.eq.s32.totalorder %s16, 1
      %p151 = scmp.ne.s32.totalorder %s146, %s148
      %p152 = scmp.eq.s32.totalorder %s16, 0
      %p153 = por %p151, %p152
      %p154 = scmp.ne.s32.totalorder %s146, %s148
      %p155 = scmp.eq.s32.totalorder %s21, 1
      %p156 = por %p154, %p155
      %p157 = scmp.ne.s32.totalorder %s148, %s149
      %p158 = scmp.eq.s32.totalorder %s21, 0
      %p159 = por %p157, %p158
      %p160 = scmp.ne.s32.totalorder %s148, %s149
      %p161 = scmp.eq.s32.totalorder %s22, 1
      %p162 = por %p160, %p161
      %p164 = scmp.ne.s32.totalorder %s149, %s163
      %p165 = scmp.eq.s32.totalorder %s22, 0
      %p166 = por %p164, %p165
      %s168 = sadd.s32 %s167, 1
      %p171 = scmp.eq.s32.totalorder %s16, 1
      %p172 = scmp.ne.s32.totalorder %s167, %s169
      %p173 = scmp.eq.s32.totalorder %s16, 0
      %p174 = por %p172, %p173
      %p175 = scmp.ne.s32.totalorder %s167, %s169
      %p176 = scmp.eq.s32.totalorder %s21, 1
      %p177 = por %p175, %p176
      %p178 = scmp.ne.s32.totalorder %s169, %s170
      %p179 = scmp.eq.s32.totalorder %s21, 0
      %p180 = por %p178, %p179
      %p181 = scmp.ne.s32.totalorder %s169, %s170
      %p182 = scmp.eq.s32.totalorder %s22, 1
      %p183 = por %p181, %p182
      %p185 = scmp.ne.s32.totalorder %s170, %s184
      %p186 = scmp.eq.s32.totalorder %s22, 0
      %p187 = por %p185, %p186
      %s188 = ssub.s32 %s23, %s35
      %s189 = ssub.s32 %s24, %s31
      %s190 = sor.u32 %s188, %s189
      %p191 = scmp.eq.s32.totalorder %s190, 0
      %s193 = sadd.s32 %s192, 1
      %s194 = scalar_select %p191, %s192, %s193
      %p197 = pneg %p191
      %p198 = scmp.eq.s32.totalorder %s16, 1
      %p199 = por %p197, %p198
      %p200 = scmp.ne.s32.totalorder %s192, %s195
      %p201 = scmp.eq.s32.totalorder %s16, 0
      %p202 = por %p200, %p201
      %p203 = scmp.ne.s32.totalorder %s192, %s195
      %p204 = scmp.eq.s32.totalorder %s21, 1
      %p205 = por %p203, %p204
      %p206 = scmp.ne.s32.totalorder %s195, %s196
      %p207 = scmp.eq.s32.totalorder %s21, 0
      %p208 = por %p206, %p207
      %p209 = scmp.ne.s32.totalorder %s195, %s196
      %p210 = scmp.eq.s32.totalorder %s22, 1
      %p211 = por %p209, %p210
      %p213 = scmp.ne.s32.totalorder %s196, %s212
      %p214 = scmp.eq.s32.totalorder %s22, 0
      %p215 = por %p213, %p214
      %p216 = scmp.le.s32.totalorder 1, %s16
      %p217 = scmp.lt.s32.totalorder %s16, 3
      %p218 = pnand %p216, %p217
      %p219 = pneg %p218
      // Predicated region
      $region9: #{tpu_custom_call.1} parent=5 // pred_check
        _
      $region10: #{tpu_custom_call.1} parent=5 // pred_check_branch
        %221 = sbr.rel (%p218) target = $region12
      $region11: #{tpu_custom_call.1} parent=5 // pred_region
        %s222 = ssub.s32 %s16, 1
        // Predicated region
        $region13: #{tpu_custom_call.1} parent=11 // pred_check
          %p223 = pneg %p75
        $region14: #{tpu_custom_call.1} parent=11 // pred_check_branch
          %225 = sbr.rel (%p223) target = $region16
        $region15: #{tpu_custom_call.1} parent=11 // pred_region
          _
        $region16: #{tpu_custom_call.1} parent=11 // pred_fallthru
          _
        // Predicated region
        $region17: #{tpu_custom_call.1} parent=11 // pred_check
          %p226 = pneg %p96
        $region18: #{tpu_custom_call.1} parent=11 // pred_check_branch
          %228 = sbr.rel (%p226) target = $region20
        $region19: #{tpu_custom_call.1} parent=11 // pred_region
          _
        $region20: #{tpu_custom_call.1} parent=11 // pred_fallthru
          _
        // Predicated region
        $region21: #{tpu_custom_call.1} parent=11 // pred_check
          %p229 = pneg %p117
        $region22: #{tpu_custom_call.1} parent=11 // pred_check_branch
          %231 = sbr.rel (%p229) target = $region24
        $region23: #{tpu_custom_call.1} parent=11 // pred_region
          _
        $region24: #{tpu_custom_call.1} parent=11 // pred_fallthru
          _
        // Predicated region
        $region25: #{tpu_custom_call.1} parent=11 // pred_check
          %p232 = pneg %p138
        $region26: #{tpu_custom_call.1} parent=11 // pred_check_branch
          %234 = sbr.rel (%p232) target = $region28
        $region27: #{tpu_custom_call.1} parent=11 // pred_region
          _
        $region28: #{tpu_custom_call.1} parent=11 // pred_fallthru
          _
        // Predicated region
        $region29: #{tpu_custom_call.1} parent=11 // pred_check
          %p235 = pneg %p159
        $region30: #{tpu_custom_call.1} parent=11 // pred_check_branch
          %237 = sbr.rel (%p235) target = $region32
        $region31: #{tpu_custom_call.1} parent=11 // pred_region
          _
        $region32: #{tpu_custom_call.1} parent=11 // pred_fallthru
          _
        // Predicated region
        $region33: #{tpu_custom_call.1} parent=11 // pred_check
          %p238 = pneg %p180
        $region34: #{tpu_custom_call.1} parent=11 // pred_check_branch
          %240 = sbr.rel (%p238) target = $region36
        $region35: #{tpu_custom_call.1} parent=11 // pred_region
          _
        $region36: #{tpu_custom_call.1} parent=11 // pred_fallthru
          _
      $region12: #{tpu_custom_call.1} parent=5 // pred_fallthru
        _
      %p241 = scmp.lt.s32.totalorder %s16, 2
      // Predicated region
      $region37: #{tpu_custom_call.1} parent=5 // pred_check
        %p242 = pneg %p241
      $region38: #{tpu_custom_call.1} parent=5 // pred_check_branch
        %244 = sbr.rel (%p242) target = $region40
      $region39: #{tpu_custom_call.1} parent=5 // pred_region
        // Predicated region
        $region41: #{tpu_custom_call.1} parent=39 // pred_check
          %p245 = pneg %p48
        $region42: #{tpu_custom_call.1} parent=39 // pred_check_branch
          %247 = sbr.rel (%p245) target = $region44
        $region43: #{tpu_custom_call.1} parent=39 // pred_region
          %p248 = scmp.lt.s32.totalorder %s23, 1
          %s249 = scalar_select %p248, %s23, 1
          %s250 = smul.addr %s249, 3
          %s251 = smul.addr %s250, 8
          %s252 = scalar_lea.vmem %s0, %s251
        $region44: #{tpu_custom_call.1} parent=39 // pred_fallthru
          _
      $region40: #{tpu_custom_call.1} parent=5 // pred_fallthru
        _
      %p253 = scmp.le.s32.totalorder 1, %s16
      %p254 = scmp.lt.s32.totalorder %s16, 3
      %p255 = pnand %p253, %p254
      %p256 = pneg %p255
      // Predicated region
      $region45: #{tpu_custom_call.1} parent=5 // pred_check
        _
      $region46: #{tpu_custom_call.1} parent=5 // pred_check_branch
        %258 = sbr.rel (%p255) target = $region48
      $region47: #{tpu_custom_call.1} parent=5 // pred_region
        %s259 = ssub.s32 %s16, 1
        %p260 = scmp.lt.s32.totalorder %s25, 1
        %s261 = scalar_select %p260, %s25, 1
        %s262 = smul.addr %s261, 3
        %s263 = smul.addr %s262, 8
        %s264 = scalar_lea.vmem %s0, %s263
        %p265 = pneg %p54
        %p266 = pneg %p51
        %p267 = pneg %p75
        %p268 = pneg %p72
        %p269 = pneg %p96
        %p270 = pneg %p93
        %p271 = pneg %p117
        %p272 = pneg %p114
        %p273 = pneg %p138
        %p274 = pneg %p135
        %p275 = pneg %p159
        %p276 = pneg %p156
        %p277 = pneg %p180
        %p278 = pneg %p177
        %p279 = pneg %p208
        %p280 = pneg %p205
        %s281 = sand.u32 %s195, 1
        %s282 = scalar_lea.sflag [#allocation3], %s281
        %s283 = sand.u32 %s195, 1
        %s284 = smul.addr %s283, 16
        %s285 = scalar_lea.vmem [#allocation2], %s284
        %p286 = scmp.lt.s32.totalorder %s25, 1
        %s287 = scalar_select %p286, %s25, 1
        %s288 = smul.addr %s287, 3
        %s289 = smul.addr %s288, 8
        %s290 = scalar_lea.vmem %s0, %s289
        %s291 = smul.u32 2, %s26
        %s292 = smul.u32 %s26, 16
        %v293 = vld [vmem:[%s1] sm:$0xff]
        %v294 = vld [vmem:[%s1 + $0x8] sm:$0x1]
        %s295 = scalar_lea.vmem %s290, %s292
        %v296 = vld [vmem:[%s295] sm:$0xff]
        %v297 = vld [vmem:[%s295 + $0x8] sm:$0xff]
        %v298 = vld [vmem:[%s295 + $0x10] sm:$0x3]
        %v299 = vlaneseq
        %v300 = vshrl.u32 %v299, 7
        %v301 = vsub.s32 0, %v300
        %v302 = vrot.slane %v293, %v301
        %v303 = vmul.f32 %v296, %v302
        %v304 = vmul.f32 %v297, %v302
        %v305 = vadd.f32 %v303, 0.0
        %v306 = vadd.f32 %v304, 0.0
        %v307 = vlaneseq
        %v308 = vshrl.u32 %v307, 7
        %v309 = vsub.s32 1, %v308
        %v310 = vrot.slane %v293, %v309
        %312 = vrot.lane.b32.xlu0 %v310, 4
        %v313 = vpop.permute.xlu0 %312
        %v315 = vmul.f32 %v296, %v313
        %v316 = vmul.f32 %v297, %v313
        %319 = vrot.lane.b32.xlu0 %v315, 124
        %v320 = vpop.permute.xlu0 %319
        %321 = vrot.lane.b32.xlu0 %v316, 124
        %v322 = vpop.permute.xlu0 %321
        %v325 = vadd.f32 %v305, %v320
        %v326 = vadd.f32 %v306, %v322
        %v327 = vlaneseq
        %v328 = vshrl.u32 %v327, 7
        %v329 = vsub.s32 2, %v328
        %v330 = vrot.slane %v293, %v329
        %332 = vrot.lane.b32.xlu0 %v330, 8
        %v333 = vpop.permute.xlu0 %332
        %v335 = vmul.f32 %v296, %v333
        %v336 = vmul.f32 %v297, %v333
        %339 = vrot.lane.b32.xlu0 %v335, 120
        %v340 = vpop.permute.xlu0 %339
        %341 = vrot.lane.b32.xlu0 %v336, 120
        %v342 = vpop.permute.xlu0 %341
        %v345 = vadd.f32 %v325, %v340
        %v346 = vadd.f32 %v326, %v342
        %v347 = vlaneseq
        %v348 = vshrl.u32 %v347, 7
        %v349 = vsub.s32 3, %v348
        %v350 = vrot.slane %v293, %v349
        %v351 = vmul.f32 %v296, %v350
        %v352 = vmul.f32 %v297, %v350
        %v353 = vmul.f32 %v298, %v350
        %vm357 = vcmask 1046528
        %v358 = vrot.slane %v351, 1
        %v359 = vrot.slane %v352, 1
        %v360 = vsel %vm357, %v358, %v359
        %v361 = vrot.slane %v353, 1
        %v362 = vsel %vm357, %v359, %v361
        %v365 = vadd.f32 %v345, %v360
        %v366 = vadd.f32 %v346, %v362
        %v367 = vlaneseq
        %v368 = vshrl.u32 %v367, 7
        %v369 = vsub.s32 4, %v368
        %v370 = vrot.slane %v293, %v369
        %372 = vrot.lane.b32.xlu0 %v370, 4
        %v373 = vpop.permute.xlu0 %372
        %v375 = vmul.f32 %v296, %v373
        %v376 = vmul.f32 %v297, %v373
        %v377 = vmul.f32 %v298, %v373
        %v381 = vrot.slane %v375, 1
        %v382 = vrot.slane %v376, 1
        %v383 = vsel %vm357, %v381, %v382
        %v384 = vrot.slane %v377, 1
        %v385 = vsel %vm357, %v382, %v384
        %386 = vrot.lane.b32.xlu0 %v383, 124
        %v387 = vpop.permute.xlu0 %386
        %388 = vrot.lane.b32.xlu0 %v385, 124
        %v389 = vpop.permute.xlu0 %388
        %v392 = vadd.f32 %v365, %v387
        %v393 = vadd.f32 %v366, %v389
        %v394 = vlaneseq
        %v395 = vshrl.u32 %v394, 7
        %v396 = vsub.s32 5, %v395
        %v397 = vrot.slane %v293, %v396
        %399 = vrot.lane.b32.xlu0 %v397, 8
        %v400 = vpop.permute.xlu0 %399
        %v402 = vmul.f32 %v296, %v400
        %v403 = vmul.f32 %v297, %v400
        %v404 = vmul.f32 %v298, %v400
        %v408 = vrot.slane %v402, 1
        %v409 = vrot.slane %v403, 1
        %v410 = vsel %vm357, %v408, %v409
        %v411 = vrot.slane %v404, 1
        %v412 = vsel %vm357, %v409, %v411
        %413 = vrot.lane.b32.xlu0 %v410, 120
        %v414 = vpop.permute.xlu0 %413
        %415 = vrot.lane.b32.xlu0 %v412, 120
        %v416 = vpop.permute.xlu0 %415
        %v419 = vadd.f32 %v392, %v414
        %v420 = vadd.f32 %v393, %v416
        %v421 = vlaneseq
        %v422 = vshrl.u32 %v421, 7
        %v423 = vsub.s32 6, %v422
        %v424 = vrot.slane %v293, %v423
        %v425 = vmul.f32 %v296, %v424
        %v426 = vmul.f32 %v297, %v424
        %v427 = vmul.f32 %v298, %v424
        %vm431 = vcmask 1045504
        %v432 = vrot.slane %v425, 2
        %v433 = vrot.slane %v426, 2
        %v434 = vsel %vm431, %v432, %v433
        %v435 = vrot.slane %v427, 2
        %v436 = vsel %vm431, %v433, %v435
        %v439 = vadd.f32 %v419, %v434
        %v440 = vadd.f32 %v420, %v436
        %v441 = vlaneseq
        %v442 = vshrl.u32 %v441, 7
        %v443 = vsub.s32 7, %v442
        %v444 = vrot.slane %v293, %v443
        %446 = vrot.lane.b32.xlu0 %v444, 4
        %v447 = vpop.permute.xlu0 %446
        %v449 = vmul.f32 %v296, %v447
        %v450 = vmul.f32 %v297, %v447
        %v451 = vmul.f32 %v298, %v447
        %v455 = vrot.slane %v449, 2
        %v456 = vrot.slane %v450, 2
        %v457 = vsel %vm431, %v455, %v456
        %v458 = vrot.slane %v451, 2
        %v459 = vsel %vm431, %v456, %v458
        %460 = vrot.lane.b32.xlu0 %v457, 124
        %v461 = vpop.permute.xlu0 %460
        %462 = vrot.lane.b32.xlu0 %v459, 124
        %v463 = vpop.permute.xlu0 %462
        %v466 = vadd.f32 %v439, %v461
        %v467 = vadd.f32 %v440, %v463
        %v468 = vlaneseq
        %v469 = vshrl.u32 %v468, 7
        %v470 = vsub.s32 0, %v469
        %v471 = vrot.slane %v294, %v470
        %473 = vrot.lane.b32.xlu0 %v471, 8
        %v474 = vpop.permute.xlu0 %473
        %v476 = vmul.f32 %v296, %v474
        %v477 = vmul.f32 %v297, %v474
        %v478 = vmul.f32 %v298, %v474
        %v482 = vrot.slane %v476, 2
        %v483 = vrot.slane %v477, 2
        %v484 = vsel %vm431, %v482, %v483
        %v485 = vrot.slane %v478, 2
        %v486 = vsel %vm431, %v483, %v485
        %487 = vrot.lane.b32.xlu0 %v484, 120
        %v488 = vpop.permute.xlu0 %487
        %489 = vrot.lane.b32.xlu0 %v486, 120
        %v490 = vpop.permute.xlu0 %489
        %v493 = vadd.f32 %v466, %v488
        %v494 = vadd.f32 %v467, %v490
        %v495 = vld [vmem:[%s2] sm:$0x1]
        %v497 = vlaneseq
        %v498 = vshrl.u32 %v497, 7
        %v499 = vsub.s32 0, %v498
        %v500 = vrot.slane %v495, %v499
        %v502 = vmul.f32 %v493, %v500
        %v503 = vmul.f32 %v494, %v500
        %v504 = vld [vmem:[%s3] sm:$0x1]
        %v506 = vlaneseq
        %v507 = vshrl.u32 %v506, 7
        %v508 = vsub.s32 0, %v507
        %v509 = vrot.slane %v504, %v508
        %v511 = vadd.f32 %v502, %v509
        %v512 = vadd.f32 %v503, %v509
        %v513 = vmax.f32 %v511, 0.0
        %v514 = vmax.f32 %v512, 0.0
        %v515 = vld [vmem:[%s4] sm:$0xff]
        %v516 = vld [vmem:[%s4 + $0x8] sm:$0xff]
        %v517 = vld [vmem:[%s4 + $0x10] sm:$0xff]
        %v518 = vld [vmem:[%s4 + $0x18] sm:$0xff]
        %v519 = vld [vmem:[%s4 + $0x20] sm:$0xff]
        %v520 = vld [vmem:[%s4 + $0x28] sm:$0xff]
        %v521 = vld [vmem:[%s4 + $0x30] sm:$0xff]
        %v522 = vld [vmem:[%s4 + $0x38] sm:$0xff]
        %vm523 = vcmask 523264
        %v525 = vsel %vm523, %v513, 0
        %v528 = vsel %vm523, %v514, 0
        %530 = vmatprep.subr.mxu0 0.0
        %531 = vmatpush1.msra.mxu0 %v515
        %532 = vmatprep.subr.mxu0 0.0
        %533 = vmatpush1.msra.mxu0 %v516
        %534 = vmatprep.subr.mxu0 0.0
        %535 = vmatpush1.msra.mxu0 %v517
        %536 = vmatprep.subr.mxu0 0.0
        %537 = vmatpush1.msra.mxu0 %v518
        %538 = vmatprep.subr.mxu0 0.0
        %539 = vmatpush1.msra.mxu0 %v519
        %540 = vmatprep.subr.mxu0 0.0
        %541 = vmatpush1.msra.mxu0 %v520
        %542 = vmatprep.subr.mxu0 0.0
        %543 = vmatpush1.msra.mxu0 %v521
        %544 = vmatprep.subr.mxu0 0.0
        %545 = vmatpush1.msra.mxu0 %v522
        %546 = vmatprep.subr.mxu0 0.0
        %547 = vmatpush1.msra.mxu0 0.0
        %548 = vmatprep.subr.mxu0 0.0
        %549 = vmatpush1.msra.mxu0 0.0
        %550 = vmatprep.subr.mxu0 0.0
        %551 = vmatpush1.msra.mxu0 0.0
        %552 = vmatprep.subr.mxu0 0.0
        %553 = vmatpush1.msra.mxu0 0.0
        %554 = vmatprep.subr.mxu0 0.0
        %555 = vmatpush1.msra.mxu0 0.0
        %556 = vmatprep.subr.mxu0 0.0
        %557 = vmatpush1.msra.mxu0 0.0
        %558 = vmatprep.subr.mxu0 0.0
        %559 = vmatpush1.msra.mxu0 0.0
        %560 = vmatprep.subr.mxu0 0.0
        %561 = vmatpush1.msra.mxu0 0.0
        %562 = vmatprep.subr.mxu0 0.0
        %563 = vmatpush1.msra.mxu0 0.0
        %564 = vmatprep.subr.mxu0 0.0
        %565 = vmatpush1.msra.mxu0 0.0
        %566 = vmatprep.subr.mxu0 0.0
        %567 = vmatpush1.msra.mxu0 0.0
        %568 = vmatprep.subr.mxu0 0.0
        %569 = vmatpush1.msra.mxu0 0.0
        %570 = vmatprep.subr.mxu0 0.0
        %571 = vmatpush1.msra.mxu0 0.0
        %572 = vmatprep.subr.mxu0 0.0
        %573 = vmatpush1.msra.mxu0 0.0
        %574 = vmatprep.subr.mxu0 0.0
        %575 = vmatpush1.msra.mxu0 0.0
        %576 = vmatprep.subr.mxu0 0.0
        %577 = vmatpush1.msra.mxu0 0.0
        %578 = vmatprep.subr.mxu0 0.0
        %579 = vmatpush1.msra.mxu0 0.0
        %580 = vmatprep.subr.mxu0 0.0
        %581 = vmatpush1.msra.mxu0 0.0
        %582 = vmatprep.subr.mxu0 0.0
        %583 = vmatpush1.msra.mxu0 0.0
        %584 = vmatprep.subr.mxu0 0.0
        %585 = vmatpush1.msra.mxu0 0.0
        %586 = vmatprep.subr.mxu0 0.0
        %587 = vmatpush1.msra.mxu0 0.0
        %588 = vmatprep.subr.mxu0 0.0
        %589 = vmatpush1.msra.mxu0 0.0
        %590 = vmatprep.subr.mxu0 0.0
        %591 = vmatpush1.msra.mxu0 0.0
        %592 = vmatprep.subr.mxu0 0.0
        %593 = vmatpush1.msra.mxu0 0.0
        %594 = vmatprep.mubr.f32.mxu0 0.0
        %595 = vmatmul.mubr.f32.gmra.mrb[0].mxu0 %v525
        %v596 = vpop.f32.mrb[0].mxu0
        %v597 = vadd.f32 0.0, %v596
        %v598 = vpop.f32.mrb[0].mxu0
        %599 = vmatprep.mubr.f32.mxu0 0.0
        %600 = vmatmul.mubr.f32.gmra.mrb[0].mxu0 %v528
        %v601 = vpop.f32.mrb[0].mxu0
        %v602 = vadd.f32 0.0, %v601
        %v603 = vpop.f32.mrb[0].mxu0
        %604 = vdwg.mxu0
        %v605 = vld [vmem:[%s5] sm:$0x1]
        %v607 = vlaneseq
        %v608 = vshrl.u32 %v607, 7
        %v609 = vsub.s32 0, %v608
        %v610 = vrot.slane %v605, %v609
        %v612 = vmul.f32 %v597, %v610
        %v613 = vmul.f32 %v602, %v610
        %v614 = vld [vmem:[%s6] sm:$0x1]
        %v616 = vlaneseq
        %v617 = vshrl.u32 %v616, 7
        %v618 = vsub.s32 0, %v617
        %v619 = vrot.slane %v614, %v618
        %v621 = vadd.f32 %v612, %v619
        %v622 = vadd.f32 %v613, %v619
        %v623 = vmax.f32 %v621, 0.0
        %v624 = vmax.f32 %v622, 0.0
        %625 = vst [vmem:[%s285] sm:$0xff] %v623
        %626 = vst [vmem:[%s285 + $0x8] sm:$0xff] %v624
        %s627 = sand.u32 %s195, 1
        %s628 = scalar_lea.sflag [#allocation3], %s627
        %s629 = sand.u32 %s195, 1
        %s630 = smul.addr %s629, 16
        %s631 = scalar_lea.vmem [#allocation2], %s630
        // Predicated region
        $region49: #{tpu_custom_call.1} parent=47 // pred_check
          %p632 = pneg %p205
        $region50: #{tpu_custom_call.1} parent=47 // pred_check_branch
          %634 = sbr.rel (%p632) target = $region52
        $region51: #{tpu_custom_call.1} parent=47 // pred_region
          %s635 = smul.u32 2, %s26
          %s637 = ssub.s32 256, 256
          %638 = vsyncadd %s628, %s637
          %s639 = smul.addr %s25, 2
          %s640 = sadd.s32 %s635, %s639
          %s641 = smul.addr %s640, 128
          %s642 = scalar_lea.hbm %s7, %s641
          %s643 = sshll.u32 %s631, 4
          %s644 = int_to_ptr.vmem [resolvable:$true] %s643
          %649 = dma.vmem_to_hbm [thread:$0]  %s644, 256, %s642, %s628, 128, 128, 8
        $region52: #{tpu_custom_call.1} parent=47 // pred_fallthru
          _
      $region48: #{tpu_custom_call.1} parent=5 // pred_fallthru
        _
      %p650 = scmp.le.s32.totalorder 2, %s16
      // Predicated region
      $region53: #{tpu_custom_call.1} parent=5 // pred_check
        %p651 = pneg %p650
      $region54: #{tpu_custom_call.1} parent=5 // pred_check_branch
        %653 = sbr.rel (%p651) target = $region56
      $region55: #{tpu_custom_call.1} parent=5 // pred_region
        %s654 = ssub.s32 %s16, 2
        // Predicated region
        $region57: #{tpu_custom_call.1} parent=55 // pred_check
          %p655 = pneg %p211
        $region58: #{tpu_custom_call.1} parent=55 // pred_check_branch
          %657 = sbr.rel (%p655) target = $region60
        $region59: #{tpu_custom_call.1} parent=55 // pred_region
          %s658 = sand.u32 %s196, 1
          %s659 = scalar_lea.sflag [#allocation3], %s658
          %s660 = sand.u32 %s196, 1
          %s661 = smul.addr %s660, 16
          %s662 = scalar_lea.vmem [#allocation2], %s661
          %663 = dma.done %s659, 256
        $region60: #{tpu_custom_call.1} parent=55 // pred_fallthru
          _
      $region56: #{tpu_custom_call.1} parent=5 // pred_fallthru
        _
    $region6: #{tpu_custom_call.1} parent=1 // loop_footer
      %s20 = sadd.s32 1, %s16
    $region7: #{tpu_custom_call.1} parent=1 // loop_footer_branch
      %15 = sbr.rel target = $region3
    $region8: #{tpu_custom_call.1} parent=1 // loop_exit
      _
    %664 = vsyncpa [#allocation3], 1
    %s665 = scalar_lea.sflag [#allocation3], 1
    %666 = vsyncpa %s665, 1

</llo_original>
